<compile_context>
chip_gen: v6e
topology: v6e:2x2x1
jax: 0.10.0
libtpu: 0.0.40
codegen_flags: <defaults>
</compile_context>

<pallas_src>
import functools

import jax
import jax.numpy as jnp
from jax.experimental import pallas as pl
from jax.experimental.pallas import tpu as pltpu

LANE = 128


def _round_up(x, m):
    return ((x + m - 1) // m) * m


def _cdiv(a, b):
    return (a + b - 1) // b


# ---------------------------------------------------------------------------
# Capability probe: can this Pallas build single-buffer a BlockSpec via
# pipeline_mode=pl.Buffered(1)?  (Constant-index weight blocks don't need
# double buffering; this halves their VMEM footprint.)
# ---------------------------------------------------------------------------
def _probe_buffered_one():
    def _copy(x_ref, o_ref):
        o_ref[...] = x_ref[...]

    try:
        fn = pl.pallas_call(
            _copy,
            out_shape=jax.ShapeDtypeStruct((8, 128), jnp.float32),
            grid=(1,),
            in_specs=[pl.BlockSpec((8, 128), lambda i: (0, 0),
                                   pipeline_mode=pl.Buffered(1))],
            out_specs=pl.BlockSpec((8, 128), lambda i: (0, 0)),
        )
        jax.block_until_ready(fn(jnp.zeros((8, 128), jnp.float32)))
        return True
    except Exception:
        return False


_BUFFERED_ONE_OK = _probe_buffered_one()


def _spec(shape, index_map, mode=None):
    if mode is None:
        return pl.BlockSpec(shape, index_map)
    return pl.BlockSpec(shape, index_map, pipeline_mode=mode)


def _vmem_cap_bytes():
    """Generation-aware soft VMEM cap with headroom for Mosaic scratch."""
    try:
        phys = pltpu.get_tpu_info().vmem_capacity_bytes
    except Exception:
        phys = 64 << 20  # conservative (v7x) fallback
    # v7x: 64 MiB -> 56 MiB usable.  v5e/v6e: 128 MiB -> cap at 112 MiB.
    return max(min(phys - (8 << 20), 112 << 20), 32 << 20)


def _vmem_budget_bytes(tile_b, in_dim, tk, out_p, n_k, x_isz, w_isz, o_isz,
                       single_buffer_weights):
    """Estimate VMEM need for one configuration (with ~1.5x headroom)."""
    w_buf = 1 if (n_k == 1 and single_buffer_weights) else 2
    b = 2 * tile_b * in_dim * x_isz                    # x tiles (double-buffered)
    b += 2 * tile_b * out_p * o_isz                    # output tiles
    b += w_buf * (in_dim * tk + tk * out_p) * w_isz    # w1 / w2 blocks
    b += w_buf * tk * 4 + out_p * 4                    # biases (f32)
    b += tile_b * out_p * 4                            # f32 accumulator scratch
    b += tile_b * tk * 4                               # f32 h intermediate
    return int(b * 1.5)


# ---------------------------------------------------------------------------
# Kernel: grid = (batch_tiles, H_tiles).  H axis is a reduction ("arbitrary");
# accumulation happens in an f32 VMEM scratch, bias2 + store at the last k.
# ---------------------------------------------------------------------------
def mlp_kernel(x_ref, w1_ref, b1_ref, w2_ref, b2_ref, out_ref, acc_ref):
    k = pl.program_id(1)

    @pl.when(k == 0)
    def _():
        acc_ref[...] = jnp.zeros_like(acc_ref)

    mxu_dt = w1_ref.dtype  # bf16 when enabled; cast happens in-kernel (no wrapper copy)
    # fc1 slice: [tile_b, In] @ [In, tk] -> f32
    h = jnp.dot(x_ref[...].astype(mxu_dt), w1_ref[...],
                preferred_element_type=jnp.float32)
    # bias + ReLU epilogue in f32 (safe on v5e: no bf16 VPU path)
    h = jnp.maximum(h + b1_ref[...], 0.0)
    # fc2 slice: [tile_b, tk] @ [tk, Out_p] -> accumulate in f32
    acc_ref[...] += jnp.dot(h.astype(mxu_dt), w2_ref[...],
                            preferred_element_type=jnp.float32)

    @pl.when(k == pl.num_programs(1) - 1)
    def _():
        out_ref[...] = (acc_ref[...] + b2_ref[...]).astype(out_ref.dtype)


def prepare_params(w1, b1, w2, b2, *, use_bf16=True):
    """One-time padding / casting of parameters (outside the hot path).

    w1: [In, H], b1: [H], w2: [H, Out], b2: [Out]
    Only H and Out are lane-padded; the contraction dim In stays unpadded
    (BlockSpec full-array dim; MXU K needs no 128 alignment).
    """
    In, H = w1.shape
    _, Out = w2.shape
    h_p = _round_up(H, LANE)
    out_p = _round_up(Out, LANE)
    wdt = jnp.bfloat16 if use_bf16 else jnp.float32

    w1_p = jnp.zeros((In, h_p), wdt).at[:, :H].set(w1.astype(wdt))
    w2_p = jnp.zeros((h_p, out_p), wdt).at[:H, :Out].set(w2.astype(wdt))
    b1_p = jnp.zeros((1, h_p), jnp.float32).at[0, :H].set(b1.astype(jnp.float32))
    b2_p = jnp.zeros((1, out_p), jnp.float32).at[0, :Out].set(b2.astype(jnp.float32))
    return w1_p, b1_p, w2_p, b2_p


@functools.partial(jax.jit, static_argnames=("out_size", "use_bf16", "tile_b"))
def mlp_forward(x, w1_p, b1_p, w2_p, b2_p, *, out_size, use_bf16=True,
                tile_b=512):
    """x: [B, In] (f32); padded params from prepare_params(); returns [B, out_size]."""
    B, In = x.shape
    in_dim, h_p = w1_p.shape
    out_p = w2_p.shape[1]
    if in_dim != In:
        raise ValueError(f"x feature dim {In} != w1 input dim {in_dim}")

    out_dt = jnp.bfloat16 if use_bf16 else jnp.float32
    sub = 16 if use_bf16 else 8  # packed bf16 sublane group is 16 rows

    # ---- balanced batch tiling; prefer >= 2 tiles so both v7x TCs get work.
    max_tile = min(tile_b, _round_up(B, sub))
    n_tiles = max(_cdiv(B, max_tile), 1)
    if B > sub:
        n_tiles = max(n_tiles, 2)
    tile_b_eff = _round_up(_cdiv(B, n_tiles), sub)
    n_tiles = _cdiv(B, tile_b_eff)
    b_pad = n_tiles * tile_b_eff

    # ---- choose H tile (tk): weights fully resident when they fit the VMEM
    # cap, otherwise reduce over H on a second grid axis.
    cap = _vmem_cap_bytes()
    x_isz = jnp.dtype(x.dtype).itemsize
    w_isz = jnp.dtype(w1_p.dtype).itemsize
    o_isz = jnp.dtype(out_dt).itemsize
    m = h_p // LANE
    tk, n_k = h_p, 1
    for cand in range(1, m + 1):
        if m % cand:
            continue
        tk, n_k = h_p // cand, cand
        if _vmem_budget_bytes(tile_b_eff, In, tk, out_p, cand, x_isz, w_isz,
                              o_isz, _BUFFERED_ONE_OK) <= cap:
            break
    budget = _vmem_budget_bytes(tile_b_eff, In, tk, out_p, n_k, x_isz, w_isz,
                                o_isz, _BUFFERED_ONE_OK)
    vmem_bytes = min(max(budget, 32 << 20), cap)

    # ---- pad batch only when needed (no feature-dim pad, no wrapper cast).
    x_p = x if b_pad == B else jnp.zeros((b_pad, In), x.dtype).at[:B].set(x)

    # Single-buffer blocks whose index map is constant for this configuration.
    const_mode = pl.Buffered(1) if _BUFFERED_ONE_OK else None
    kconst_mode = const_mode if n_k == 1 else None

    in_specs = [
        pl.BlockSpec((tile_b_eff, In), lambda i, k: (i, 0)),     # activations
        _spec((In, tk), lambda i, k: (0, k), kconst_mode),       # w1 slice
        _spec((1, tk), lambda i, k: (0, k), kconst_mode),        # b1 slice
        _spec((tk, out_p), lambda i, k: (k, 0), kconst_mode),    # w2 slice
        _spec((1, out_p), lambda i, k: (0, 0), const_mode),      # b2
    ]

    y_pad = pl.pallas_call(
        mlp_kernel,
        out_shape=jax.ShapeDtypeStruct((b_pad, out_p), out_dt),
        grid=(n_tiles, n_k),
        in_specs=in_specs,
        out_specs=pl.BlockSpec((tile_b_eff, out_p), lambda i, k: (i, 0)),
        scratch_shapes=[pltpu.VMEM((tile_b_eff, out_p), jnp.float32)],
        compiler_params=pltpu.CompilerParams(
            dimension_semantics=("parallel", "arbitrary"),
            vmem_limit_bytes=vmem_bytes,
        ),
    )(x_p, w1_p, b1_p, w2_p, b2_p)

    # Un-pad: batch rows and output lanes beyond the real problem are sliced off.
    return y_pad[:B, :out_size]


def init_params(key, input_size, hidden_size, output_size):
    """Deterministic init mimicking nn.Linear's U(-1/sqrt(fan_in), 1/sqrt(fan_in))."""
    k1, k2, k3, k4 = jax.random.split(key, 4)
    bound1 = 1.0 / jnp.sqrt(input_size)
    bound2 = 1.0 / jnp.sqrt(hidden_size)
    # Stored as [in_features, out_features] (transpose of PyTorch's layout),
    # so the kernel computes x @ W + b == PyTorch's x @ W_pt.T + b.
    w1 = jax.random.uniform(k1, (input_size, hidden_size), jnp.float32, -bound1, bound1)
    b1 = jax.random.uniform(k2, (hidden_size,), jnp.float32, -bound1, bound1)
    w2 = jax.random.uniform(k3, (hidden_size, output_size), jnp.float32, -bound2, bound2)
    b2 = jax.random.uniform(k4, (output_size,), jnp.float32, -bound2, bound2)
    return w1, b1, w2, b2


if __name__ == "__main__":
    # Small shapes consistent with the module: input=32, hidden=64, output=16.
    input_size, hidden_size, output_size = 32, 64, 16

    key = jax.random.PRNGKey(0)
    kx, kx2, kp = jax.random.split(key, 3)
    w1, b1, w2, b2 = init_params(kp, input_size, hidden_size, output_size)

    def ref_fn(xx):
        return jnp.maximum(xx @ w1 + b1, 0.0) @ w2 + b2

    # --- batch = 8, f32 path (exact match to reference) ---
    x = jax.random.normal(kx, (8, input_size), jnp.float32)
    p_f32 = prepare_params(w1, b1, w2, b2, use_bf16=False)
    out = mlp_forward(x, *p_f32, out_size=output_size, use_bf16=False)
    out = jax.block_until_ready(out)
    assert out.shape == (8, output_size)
    assert jnp.allclose(out, ref_fn(x), atol=1e-5, rtol=1e-5)

    # --- batch = 50 (odd: exercises batch padding + multi-tile grid), f32 ---
    x2 = jax.random.normal(kx2, (50, input_size), jnp.float32)
    out2 = mlp_forward(x2, *p_f32, out_size=output_size, use_bf16=False)
    out2 = jax.block_until_ready(out2)
    assert out2.shape == (50, output_size)
    assert jnp.allclose(out2, ref_fn(x2), atol=1e-5, rtol=1e-5)

    # --- bf16 MXU path (f32 accumulation, bf16 output) — loose tolerance ---
    p_bf16 = prepare_params(w1, b1, w2, b2, use_bf16=True)
    out_bf = mlp_forward(x, *p_bf16, out_size=output_size, use_bf16=True)
    out_bf = jax.block_until_ready(out_bf)
    assert out_bf.shape == (8, output_size)
    assert jnp.allclose(out_bf.astype(jnp.float32), ref_fn(x), atol=3e-2, rtol=3e-2)

    print("KERNEL_OK")
</pallas_src>

<mosaic_0001>
module attributes {stable_mosaic.version = 11 : i64} {
  func.func @_copy(%arg0: i32, %arg1: memref<8x128xf32, #tpu.memory_space<vmem>>, %arg2: memref<8x128xf32, #tpu.memory_space<vmem>>) attributes {dimension_semantics = [#tpu.dimension_semantics<arbitrary>], iteration_bounds = array<i64: 1>, scalar_prefetch = 0 : i64, scratch_operands = 0 : i64, tpu.core_type = #tpu.core_type<tc>, window_params = [{pipeline_mode = #tpu.pipeline_mode<synchronous>, transform_indices = @transform_0, window_bounds = array<i64: 8, 128>}, {pipeline_mode = #tpu.pipeline_mode<synchronous>, transform_indices = @transform_1, window_bounds = array<i64: 8, 128>}]} {
    %c0 = arith.constant 0 : index
    %c0_0 = arith.constant 0 : index
    %0 = vector.load %arg1[%c0, %c0_0] : memref<8x128xf32, #tpu.memory_space<vmem>>, vector<8x128xf32>
    %c0_1 = arith.constant 0 : index
    %c0_2 = arith.constant 0 : index
    %1 = vector.load %arg2[%c0_1, %c0_2] : memref<8x128xf32, #tpu.memory_space<vmem>>, vector<8x128xf32>
    tpu.vector_store %arg2[%c0_1, %c0_2], %0 {strides = array<i32>} : memref<8x128xf32, #tpu.memory_space<vmem>>, vector<8x128xf32>,
    return
  }
  func.func @transform_0(%arg0: i32) -> (i32, i32) {
    %c0_i32 = arith.constant 0 : i32
    %c0_i32_0 = arith.constant 0 : i32
    %c0_i32_1 = arith.constant 0 : i32
    return %c0_i32, %c0_i32_0 : i32, i32
  }
  func.func @transform_1(%arg0: i32) -> (i32, i32) {
    %c0_i32 = arith.constant 0 : i32
    %c0_i32_0 = arith.constant 0 : i32
    %c0_i32_1 = arith.constant 0 : i32
    return %c0_i32, %c0_i32_0 : i32, i32
  }
}

module attributes {stable_mosaic.version = 11 : i64} {
  func.func @mlp_kernel(%arg0: i32, %arg1: i32, %arg2: memref<8x32xf32, #tpu.memory_space<vmem>>, %arg3: memref<32x128xf32, #tpu.memory_space<vmem>>, %arg4: memref<1x128xf32, #tpu.memory_space<vmem>>, %arg5: memref<128x128xf32, #tpu.memory_space<vmem>>, %arg6: memref<1x128xf32, #tpu.memory_space<vmem>>, %arg7: memref<8x128xf32, #tpu.memory_space<vmem>>, %arg8: memref<8x128xf32, #tpu.memory_space<vmem>>) attributes {dimension_semantics = [#tpu.dimension_semantics<parallel>, #tpu.dimension_semantics<arbitrary>], iteration_bounds = array<i64: 1, 1>, scalar_prefetch = 0 : i64, scratch_operands = 1 : i64, tpu.core_type = #tpu.core_type<tc>, window_params = [{transform_indices = @transform_0, window_bounds = array<i64: 8, 32>}, {transform_indices = @transform_1, window_bounds = array<i64: 32, 128>}, {transform_indices = @transform_2, window_bounds = array<i64: 1, 128>}, {transform_indices = @transform_3, window_bounds = array<i64: 128, 128>}, {pipeline_mode = #tpu.pipeline_mode<synchronous>, transform_indices = @transform_4, window_bounds = array<i64: 1, 128>}, {transform_indices = @transform_5, window_bounds = array<i64: 8, 128>}]} {
    %c0_i32 = arith.constant 0 : i32
    %0 = arith.cmpi eq, %arg1, %c0_i32 : i32
    %1 = arith.extui %0 : i1 to i32
    %c0_i32_0 = arith.constant 0 : i32
    %2 = arith.cmpi ne, %1, %c0_i32_0 : i32
    scf.if %2 {
      %cst_16 = arith.constant 0.000000e+00 : f32
      %19 = vector.broadcast %cst_16 : f32 to vector<8x128xf32>
      %c0_17 = arith.constant 0 : index
      %c0_18 = arith.constant 0 : index
      %20 = vector.load %arg8[%c0_17, %c0_18] : memref<8x128xf32, #tpu.memory_space<vmem>>, vector<8x128xf32>
      tpu.vector_store %arg8[%c0_17, %c0_18], %19 {strides = array<i32>} : memref<8x128xf32, #tpu.memory_space<vmem>>, vector<8x128xf32>,
    } else {
    }
    %c0 = arith.constant 0 : index
    %c0_1 = arith.constant 0 : index
    %3 = vector.load %arg2[%c0, %c0_1] : memref<8x32xf32, #tpu.memory_space<vmem>>, vector<8x32xf32>
    %c0_2 = arith.constant 0 : index
    %c0_3 = arith.constant 0 : index
    %4 = vector.load %arg3[%c0_2, %c0_3] : memref<32x128xf32, #tpu.memory_space<vmem>>, vector<32x128xf32>
    %cst = arith.constant dense<0.000000e+00> : vector<8x128xf32>
    %5 = tpu.matmul %3, %4, %cst {dimension_numbers = #tpu.dot_dimension_numbers<[1], [0], [0], [1], [0, 0, 1, 1], [], []>} : vector<8x32xf32>, vector<32x128xf32>, vector<8x128xf32> -> vector<8x128xf32>
    %c0_4 = arith.constant 0 : index
    %c0_5 = arith.constant 0 : index
    %6 = vector.load %arg4[%c0_4, %c0_5] : memref<1x128xf32, #tpu.memory_space<vmem>>, vector<1x128xf32>
    %7 = vector.broadcast %6 : vector<1x128xf32> to vector<8x128xf32>
    %8 = arith.addf %5, %7 : vector<8x128xf32>
    %cst_6 = arith.constant 0.000000e+00 : f32
    %9 = vector.broadcast %cst_6 : f32 to vector<8x128xf32>
    %10 = arith.maximumf %8, %9 : vector<8x128xf32>
    %c0_7 = arith.constant 0 : index
    %c0_8 = arith.constant 0 : index
    %11 = vector.load %arg8[%c0_7, %c0_8] : memref<8x128xf32, #tpu.memory_space<vmem>>, vector<8x128xf32>
    %c0_9 = arith.constant 0 : index
    %c0_10 = arith.constant 0 : index
    %12 = vector.load %arg5[%c0_9, %c0_10] : memref<128x128xf32, #tpu.memory_space<vmem>>, vector<128x128xf32>
    %cst_11 = arith.constant dense<0.000000e+00> : vector<8x128xf32>
    %13 = tpu.matmul %10, %12, %cst_11 {dimension_numbers = #tpu.dot_dimension_numbers<[1], [0], [0], [1], [0, 0, 1, 1], [], []>} : vector<8x128xf32>, vector<128x128xf32>, vector<8x128xf32> -> vector<8x128xf32>
    %14 = arith.addf %11, %13 : vector<8x128xf32>
    %c0_12 = arith.constant 0 : index
    %c0_13 = arith.constant 0 : index
    %15 = vector.load %arg8[%c0_12, %c0_13] : memref<8x128xf32, #tpu.memory_space<vmem>>, vector<8x128xf32>
    tpu.vector_store %arg8[%c0_12, %c0_13], %14 {strides = array<i32>} : memref<8x128xf32, #tpu.memory_space<vmem>>, vector<8x128xf32>,
    %c0_i32_14 = arith.constant 0 : i32
    %16 = arith.cmpi eq, %arg1, %c0_i32_14 : i32
    %17 = arith.extui %16 : i1 to i32
    %c0_i32_15 = arith.constant 0 : i32
    %18 = arith.cmpi ne, %17, %c0_i32_15 : i32
    scf.if %18 {
      %c0_16 = arith.constant 0 : index
      %c0_17 = arith.constant 0 : index
      %19 = vector.load %arg8[%c0_16, %c0_17] : memref<8x128xf32, #tpu.memory_space<vmem>>, vector<8x128xf32>
      %c0_18 = arith.constant 0 : index
      %c0_19 = arith.constant 0 : index
      %20 = vector.load %arg6[%c0_18, %c0_19] : memref<1x128xf32, #tpu.memory_space<vmem>>, vector<1x128xf32>
      %21 = vector.broadcast %20 : vector<1x128xf32> to vector<8x128xf32>
      %22 = arith.addf %19, %21 : vector<8x128xf32>
      %c0_20 = arith.constant 0 : index
      %c0_21 = arith.constant 0 : index
      %23 = vector.load %arg7[%c0_20, %c0_21] : memref<8x128xf32, #tpu.memory_space<vmem>>, vector<8x128xf32>
      tpu.vector_store %arg7[%c0_20, %c0_21], %22 {strides = array<i32>} : memref<8x128xf32, #tpu.memory_space<vmem>>, vector<8x128xf32>,
    } else {
    }
    return
  }
  func.func @transform_0(%arg0: i32, %arg1: i32) -> (i32, i32) {
    %c0_i32 = arith.constant 0 : i32
    %c0_i32_0 = arith.constant 0 : i32
    return %arg0, %c0_i32 : i32, i32
  }
  func.func @transform_1(%arg0: i32, %arg1: i32) -> (i32, i32) {
    %c0_i32 = arith.constant 0 : i32
    %c0_i32_0 = arith.constant 0 : i32
    return %c0_i32, %arg1 : i32, i32
  }
  func.func @transform_2(%arg0: i32, %arg1: i32) -> (i32, i32) {
    %c0_i32 = arith.constant 0 : i32
    %c0_i32_0 = arith.constant 0 : i32
    return %c0_i32, %arg1 : i32, i32
  }
  func.func @transform_3(%arg0: i32, %arg1: i32) -> (i32, i32) {
    %c0_i32 = arith.constant 0 : i32
    %c0_i32_0 = arith.constant 0 : i32
    return %arg1, %c0_i32 : i32, i32
  }
  func.func @transform_4(%arg0: i32, %arg1: i32) -> (i32, i32) {
    %c0_i32 = arith.constant 0 : i32
    %c0_i32_0 = arith.constant 0 : i32
    %c0_i32_1 = arith.constant 0 : i32
    return %c0_i32, %c0_i32_0 : i32, i32
  }
  func.func @transform_5(%arg0: i32, %arg1: i32) -> (i32, i32) {
    %c0_i32 = arith.constant 0 : i32
    %c0_i32_0 = arith.constant 0 : i32
    return %arg0, %c0_i32 : i32, i32
  }
}

</mosaic_0001>

<llo_original>
// kernel: tpu_custom_call.1
$region0: #{tpu_custom_call.1}
  #allocation0 [shape = 'u32[]', space=smem, size = 0x4, offset = 0x4, fixed_abs, tag = 'smem constant byte address 0x4 - core index']
  #allocation1 [shape = 'u32[144,128]{1,0:T(1,128)}', space=vmem, size = 0x12000, scoped, tag = 'internal scratch']
  %s0 = inlined_call_operand.hbm [shape: f32[8,128], index: 0, kind: input, shape index: {}]
  %s1 = inlined_call_operand.hbm [shape: f32[8,128], index: 1, kind: output, shape index: {}]
  %s2 = sld [smem:[#allocation0]]
  $region18: #{tpu_custom_call.1} parent=0
    _
  %s4 = ssub.s32 1, %s2
  %s5 = scalar_select 0, %s4, %s2
  $region1: #{tpu_custom_call.1} parent=0
    #allocation2 [shape = 'u8[4096]{0}', space=vmem, size = 0x1000, scoped, tag = 'input window, operand 0, single buffered']
    #allocation3 [shape = 's32[1]{0}', space=sflag, size = 0x4, scoped, tag = 'scoped memory for tpu_custom_call.1']
    #allocation4 [shape = 's32[1]{0}', space=sflag, size = 0x4, scoped, tag = 'scoped memory for tpu_custom_call.1']
    #allocation5 [shape = 'u8[4096]{0}', space=vmem, size = 0x1000, scoped, tag = 'output window, operand 0, single buffered']
    %6 = vsyncpa [#allocation3], 0
    %7 = vsyncpa [#allocation4], 0
    // Predicated region
    $region2: #{tpu_custom_call.1} parent=1 // pred_check
      _
    $region3: #{tpu_custom_call.1} parent=1 // pred_check_branch
      %9 = sbr.rel (0) target = $region5
    $region4: #{tpu_custom_call.1} parent=1 // pred_region
      %s11 = ssub.s32 128, 128
      %12 = vsyncadd [#allocation3], %s11
      %s14 = sshll.u32 [#allocation2], 4
      %s15 = int_to_ptr.vmem [resolvable:$true] %s14
      %17 = dma.hbm_to_vmem [thread:$0]  %s0, 128, %s15, [#allocation3]
    $region5: #{tpu_custom_call.1} parent=1 // pred_fallthru
      _
    // Predicated region
    $region6: #{tpu_custom_call.1} parent=1 // pred_check
      _
    $region7: #{tpu_custom_call.1} parent=1 // pred_check_branch
      %19 = sbr.rel (0) target = $region9
    $region8: #{tpu_custom_call.1} parent=1 // pred_region
      %20 = dma.done [#allocation3], 128
    $region9: #{tpu_custom_call.1} parent=1 // pred_fallthru
      _
    %v21 = vld [vmem:[#allocation2] sm:$0xff]
    %22 = vst [vmem:[#allocation5] sm:$0xff] %v21
    // Predicated region
    $region10: #{tpu_custom_call.1} parent=1 // pred_check
      _
    $region11: #{tpu_custom_call.1} parent=1 // pred_check_branch
      %24 = sbr.rel (0) target = $region13
    $region12: #{tpu_custom_call.1} parent=1 // pred_region
      %s26 = ssub.s32 128, 128
      %27 = vsyncadd [#allocation4], %s26
      %s29 = sshll.u32 [#allocation5], 4
      %s30 = int_to_ptr.vmem [resolvable:$true] %s29
      %32 = dma.vmem_to_hbm [thread:$0]  %s30, 128, %s1, [#allocation4]
    $region13: #{tpu_custom_call.1} parent=1 // pred_fallthru
      _
    // Predicated region
    $region14: #{tpu_custom_call.1} parent=1 // pred_check
      _
    $region15: #{tpu_custom_call.1} parent=1 // pred_check_branch
      %34 = sbr.rel (0) target = $region17
    $region16: #{tpu_custom_call.1} parent=1 // pred_region
      %35 = dma.done [#allocation4], 128
    $region17: #{tpu_custom_call.1} parent=1 // pred_fallthru
      _
    %36 = vsyncpa [#allocation3], 1
    %37 = vsyncpa [#allocation4], 1

// kernel: mlp_forward.1
$region0: #{mlp_forward.1}
  #allocation0 [shape = 'u32[]', space=smem, size = 0x4, offset = 0x4, fixed_abs, tag = 'smem constant byte address 0x4 - core index']
  #allocation1 [shape = 'u32[144,128]{1,0:T(1,128)}', space=vmem, size = 0x12000, scoped, tag = 'internal scratch']
  #allocation2 [shape = 'f32[8,128]{1,0:T(8,128)}', space=vmem, size = 0x1000, scoped, tag = 'scratch operand']
  %s0 = inlined_call_operand.hbm [shape: f32[8,32], index: 0, kind: input, shape index: {}]
  %s1 = inlined_call_operand.hbm [shape: f32[32,128], index: 1, kind: input, shape index: {}]
  %s2 = inlined_call_operand.vmem [shape: f32[1,128], index: 2, kind: input, shape index: {}]
  %s3 = inlined_call_operand.hbm [shape: f32[128,128], index: 3, kind: input, shape index: {}]
  %s4 = inlined_call_operand.vmem [shape: f32[1,128], index: 4, kind: input, shape index: {}]
  %s5 = inlined_call_operand.hbm [shape: f32[8,128], index: 5, kind: output, shape index: {}]
  %s6 = sld [smem:[#allocation0]]
  $region50: #{mlp_forward.1} parent=0
    _
  %s8 = ssub.s32 1, %s6
  %s9 = scalar_select 0, %s8, %s6
  $region1: #{mlp_forward.1} parent=0
    #allocation3 [shape = 'u8[4096]{0}', space=vmem, size = 0x1000, scoped, tag = 'input window, operand 0, single buffered']
    #allocation4 [shape = 's32[1]{0}', space=sflag, size = 0x4, scoped, tag = 'scoped memory for mlp_forward.1']
    #allocation5 [shape = 's32[1]{0}', space=sflag, size = 0x4, scoped, tag = 'scoped memory for mlp_forward.1']
    #allocation6 [shape = 'u8[16384]{0}', space=vmem, size = 0x4000, scoped, tag = 'input window, operand 1, single buffered']
    #allocation7 [shape = 's32[1]{0}', space=sflag, size = 0x4, scoped, tag = 'scoped memory for mlp_forward.1']
    #allocation8 [shape = 'u8[65536]{0}', space=vmem, size = 0x10000, scoped, tag = 'input window, operand 3, single buffered']
    #allocation9 [shape = 'u8[4096]{0}', space=vmem, size = 0x1000, scoped, tag = 'output window, operand 0, single buffered']
    %10 = vsyncpa [#allocation4], 0
    %11 = vsyncpa [#allocation7], 0
    %12 = vsyncpa [#allocation5], 0
    // Predicated region
    $region2: #{mlp_forward.1} parent=1 // pred_check
      _
    $region3: #{mlp_forward.1} parent=1 // pred_check_branch
      %14 = sbr.rel (0) target = $region5
    $region4: #{mlp_forward.1} parent=1 // pred_region
      %s16 = ssub.s32 128, 128
      %17 = vsyncadd [#allocation4], %s16
      %s19 = sshll.u32 [#allocation3], 4
      %s20 = int_to_ptr.vmem [resolvable:$true] %s19
      %22 = dma.hbm_to_vmem [thread:$0]  %s0, 128, %s20, [#allocation4]
    $region5: #{mlp_forward.1} parent=1 // pred_fallthru
      _
    // Predicated region
    $region6: #{mlp_forward.1} parent=1 // pred_check
      _
    $region7: #{mlp_forward.1} parent=1 // pred_check_branch
      %24 = sbr.rel (0) target = $region9
    $region8: #{mlp_forward.1} parent=1 // pred_region
      %s26 = ssub.s32 512, 512
      %27 = vsyncadd [#allocation7], %s26
      %s28 = sshll.u32 [#allocation6], 4
      %s29 = int_to_ptr.vmem [resolvable:$true] %s28
      %34 = dma.hbm_to_vmem [thread:$0]  %s1, 512, %s29, [#allocation7], 128, 128, 8
    $region9: #{mlp_forward.1} parent=1 // pred_fallthru
      _
    // Predicated region
    $region10: #{mlp_forward.1} parent=1 // pred_check
      _
    $region11: #{mlp_forward.1} parent=1 // pred_check_branch
      %36 = sbr.rel (0) target = $region13
    $region12: #{mlp_forward.1} parent=1 // pred_region
      _
    $region13: #{mlp_forward.1} parent=1 // pred_fallthru
      _
    // Predicated region
    $region14: #{mlp_forward.1} parent=1 // pred_check
      _
    $region15: #{mlp_forward.1} parent=1 // pred_check_branch
      %38 = sbr.rel (0) target = $region17
    $region16: #{mlp_forward.1} parent=1 // pred_region
      %s40 = ssub.s32 2048, 2048
      %41 = vsyncadd [#allocation7], %s40
      %s42 = sshll.u32 [#allocation8], 4
      %s43 = int_to_ptr.vmem [resolvable:$true] %s42
      %48 = dma.hbm_to_vmem [thread:$0]  %s3, 2048, %s43, [#allocation7], 128, 128, 8
    $region17: #{mlp_forward.1} parent=1 // pred_fallthru
      _
    // Predicated region
    $region18: #{mlp_forward.1} parent=1 // pred_check
      _
    $region19: #{mlp_forward.1} parent=1 // pred_check_branch
      %50 = sbr.rel (0) target = $region21
    $region20: #{mlp_forward.1} parent=1 // pred_region
      _
    $region21: #{mlp_forward.1} parent=1 // pred_fallthru
      _
    // Predicated region
    $region22: #{mlp_forward.1} parent=1 // pred_check
      _
    $region23: #{mlp_forward.1} parent=1 // pred_check_branch
      %52 = sbr.rel (0) target = $region25
    $region24: #{mlp_forward.1} parent=1 // pred_region
      %53 = dma.done [#allocation4], 128
    $region25: #{mlp_forward.1} parent=1 // pred_fallthru
      _
    // Predicated region
    $region26: #{mlp_forward.1} parent=1 // pred_check
      _
    $region27: #{mlp_forward.1} parent=1 // pred_check_branch
      %55 = sbr.rel (0) target = $region29
    $region28: #{mlp_forward.1} parent=1 // pred_region
      %56 = dma.done [#allocation7], 512
    $region29: #{mlp_forward.1} parent=1 // pred_fallthru
      _
    // Predicated region
    $region30: #{mlp_forward.1} parent=1 // pred_check
      _
    $region31: #{mlp_forward.1} parent=1 // pred_check_branch
      %58 = sbr.rel (0) target = $region33
    $region32: #{mlp_forward.1} parent=1 // pred_region
      %59 = dma.done [#allocation7], 2048
    $region33: #{mlp_forward.1} parent=1 // pred_fallthru
      _
    %p60 = scmp.eq.s32.totalorder 0, 0
    // Predicated region
    $region34: #{mlp_forward.1} parent=1 // pred_check
      %p61 = pneg %p60
    $region35: #{mlp_forward.1} parent=1 // pred_check_branch
      %63 = sbr.rel (%p61) target = $region37
    $region36: #{mlp_forward.1} parent=1 // pred_region
      %64 = vst [vmem:[#allocation2] sm:$0xff] 0.0
    $region37: #{mlp_forward.1} parent=1 // pred_fallthru
      _
    %v65 = vld [vmem:[#allocation3] sm:$0xff]
    %v66 = vld [vmem:[#allocation6] sm:$0xff]
    %v67 = vld [vmem:[#allocation6 + $0x8] sm:$0xff]
    %v68 = vld [vmem:[#allocation6 + $0x10] sm:$0xff]
    %v69 = vld [vmem:[#allocation6 + $0x18] sm:$0xff]
    %v70 = vld [vmem:[%s2] sm:$0x1]
    %v72 = vlaneseq
    %v73 = vshrl.u32 %v72, 7
    %v74 = vsub.s32 0, %v73
    %v75 = vrot.slane %v70, %v74
    %vm77 = vcmask 261120
    %v79 = vsel %vm77, %v65, 0
    %81 = vmatprep.subr.mxu0 0.0
    %82 = vmatpush1.msra.mxu0 0.0
    %83 = vmatprep.subr.mxu0 0.0
    %84 = vmatpush1.msra.mxu0 0.0
    %85 = vmatprep.subr.mxu0 0.0
    %86 = vmatpush1.msra.mxu0 0.0
    %87 = vmatprep.subr.mxu0 0.0
    %88 = vmatpush1.msra.mxu0 0.0
    %89 = vmatprep.subr.mxu0 0.0
    %90 = vmatpush1.msra.mxu0 0.0
    %91 = vmatprep.subr.mxu0 0.0
    %92 = vmatpush1.msra.mxu0 0.0
    %93 = vmatprep.subr.mxu0 0.0
    %94 = vmatpush1.msra.mxu0 0.0
    %95 = vmatprep.subr.mxu0 0.0
    %96 = vmatpush1.msra.mxu0 0.0
    %97 = vmatprep.subr.mxu0 0.0
    %98 = vmatpush1.msra.mxu0 0.0
    %99 = vmatprep.subr.mxu0 0.0
    %100 = vmatpush1.msra.mxu0 0.0
    %101 = vmatprep.subr.mxu0 0.0
    %102 = vmatpush1.msra.mxu0 0.0
    %103 = vmatprep.subr.mxu0 0.0
    %104 = vmatpush1.msra.mxu0 0.0
    %105 = vmatprep.subr.mxu0 0.0
    %106 = vmatpush1.msra.mxu0 %v69
    %107 = vmatprep.subr.mxu0 0.0
    %108 = vmatpush1.msra.mxu0 %v68
    %109 = vmatprep.subr.mxu0 0.0
    %110 = vmatpush1.msra.mxu0 %v67
    %111 = vmatprep.subr.mxu0 0.0
    %112 = vmatpush1.msra.mxu0 %v66
    %113 = vmatprep.subr.mxu0 0.0
    %114 = vmatpush2.msra.mxu0 0.0
    %115 = vmatprep.subr.mxu0 0.0
    %116 = vmatpush2.msra.mxu0 0.0
    %117 = vmatprep.subr.mxu0 0.0
    %118 = vmatpush2.msra.mxu0 0.0
    %119 = vmatprep.subr.mxu0 0.0
    %120 = vmatpush2.msra.mxu0 0.0
    %121 = vmatprep.subr.mxu0 0.0
    %122 = vmatpush2.msra.mxu0 0.0
    %123 = vmatprep.subr.mxu0 0.0
    %124 = vmatpush2.msra.mxu0 0.0
    %125 = vmatprep.subr.mxu0 0.0
    %126 = vmatpush2.msra.mxu0 0.0
    %127 = vmatprep.subr.mxu0 0.0
    %128 = vmatpush2.msra.mxu0 0.0
    %129 = vmatprep.subr.mxu0 0.0
    %130 = vmatpush2.msra.mxu0 0.0
    %131 = vmatprep.subr.mxu0 0.0
    %132 = vmatpush2.msra.mxu0 0.0
    %133 = vmatprep.subr.mxu0 0.0
    %134 = vmatpush2.msra.mxu0 0.0
    %135 = vmatprep.subr.mxu0 0.0
    %136 = vmatpush2.msra.mxu0 0.0
    %137 = vmatprep.subr.mxu0 0.0
    %138 = vmatpush2.msra.mxu0 0.0
    %139 = vmatprep.subr.mxu0 0.0
    %140 = vmatpush2.msra.mxu0 0.0
    %141 = vmatprep.subr.mxu0 0.0
    %142 = vmatpush2.msra.mxu0 0.0
    %143 = vmatprep.subr.mxu0 0.0
    %144 = vmatpush2.msra.mxu0 0.0
    %145 = vmatprep.mubr.f32.mxu0 0.0
    %146 = vmatmul.mubr.f32.gmra.mxu0 %v79
    %v147 = vpop.f32.mrf.mxu0
    %v148 = vadd.f32 %v75, %v147
    %v149 = vpop.f32.mrf.mxu0
    %150 = vdwg.mxu0
    %v151 = vmax.f32 %v148, 0.0
    %v152 = vld [vmem:[#allocation2] sm:$0xff]
    %v153 = vld [vmem:[#allocation8] sm:$0xff]
    %v154 = vld [vmem:[#allocation8 + $0x8] sm:$0xff]
    %v155 = vld [vmem:[#allocation8 + $0x10] sm:$0xff]
    %v156 = vld [vmem:[#allocation8 + $0x18] sm:$0xff]
    %v157 = vld [vmem:[#allocation8 + $0x20] sm:$0xff]
    %v158 = vld [vmem:[#allocation8 + $0x28] sm:$0xff]
    %v159 = vld [vmem:[#allocation8 + $0x30] sm:$0xff]
    %v160 = vld [vmem:[#allocation8 + $0x38] sm:$0xff]
    %v161 = vld [vmem:[#allocation8 + $0x40] sm:$0xff]
    %v162 = vld [vmem:[#allocation8 + $0x48] sm:$0xff]
    %v163 = vld [vmem:[#allocation8 + $0x50] sm:$0xff]
    %v164 = vld [vmem:[#allocation8 + $0x58] sm:$0xff]
    %v165 = vld [vmem:[#allocation8 + $0x60] sm:$0xff]
    %v166 = vld [vmem:[#allocation8 + $0x68] sm:$0xff]
    %v167 = vld [vmem:[#allocation8 + $0x70] sm:$0xff]
    %v168 = vld [vmem:[#allocation8 + $0x78] sm:$0xff]
    %169 = vmatprep.subr.mxu0 0.0
    %170 = vmatpush1.msra.mxu0 %v168
    %171 = vmatprep.subr.mxu0 0.0
    %172 = vmatpush1.msra.mxu0 %v167
    %173 = vmatprep.subr.mxu0 0.0
    %174 = vmatpush1.msra.mxu0 %v166
    %175 = vmatprep.subr.mxu0 0.0
    %176 = vmatpush1.msra.mxu0 %v165
    %177 = vmatprep.subr.mxu0 0.0
    %178 = vmatpush1.msra.mxu0 %v164
    %179 = vmatprep.subr.mxu0 0.0
    %180 = vmatpush1.msra.mxu0 %v163
    %181 = vmatprep.subr.mxu0 0.0
    %182 = vmatpush1.msra.mxu0 %v162
    %183 = vmatprep.subr.mxu0 0.0
    %184 = vmatpush1.msra.mxu0 %v161
    %185 = vmatprep.subr.mxu0 0.0
    %186 = vmatpush1.msra.mxu0 %v160
    %187 = vmatprep.subr.mxu0 0.0
    %188 = vmatpush1.msra.mxu0 %v159
    %189 = vmatprep.subr.mxu0 0.0
    %190 = vmatpush1.msra.mxu0 %v158
    %191 = vmatprep.subr.mxu0 0.0
    %192 = vmatpush1.msra.mxu0 %v157
    %193 = vmatprep.subr.mxu0 0.0
    %194 = vmatpush1.msra.mxu0 %v156
    %195 = vmatprep.subr.mxu0 0.0
    %196 = vmatpush1.msra.mxu0 %v155
    %197 = vmatprep.subr.mxu0 0.0
    %198 = vmatpush1.msra.mxu0 %v154
    %199 = vmatprep.subr.mxu0 0.0
    %200 = vmatpush1.msra.mxu0 %v153
    %201 = vmatprep.subr.mxu0 0.0
    %202 = vmatpush2.msra.mxu0 0.0
    %203 = vmatprep.subr.mxu0 0.0
    %204 = vmatpush2.msra.mxu0 0.0
    %205 = vmatprep.subr.mxu0 0.0
    %206 = vmatpush2.msra.mxu0 0.0
    %207 = vmatprep.subr.mxu0 0.0
    %208 = vmatpush2.msra.mxu0 0.0
    %209 = vmatprep.subr.mxu0 0.0
    %210 = vmatpush2.msra.mxu0 0.0
    %211 = vmatprep.subr.mxu0 0.0
    %212 = vmatpush2.msra.mxu0 0.0
    %213 = vmatprep.subr.mxu0 0.0
    %214 = vmatpush2.msra.mxu0 0.0
    %215 = vmatprep.subr.mxu0 0.0
    %216 = vmatpush2.msra.mxu0 0.0
    %217 = vmatprep.subr.mxu0 0.0
    %218 = vmatpush2.msra.mxu0 0.0
    %219 = vmatprep.subr.mxu0 0.0
    %220 = vmatpush2.msra.mxu0 0.0
    %221 = vmatprep.subr.mxu0 0.0
    %222 = vmatpush2.msra.mxu0 0.0
    %223 = vmatprep.subr.mxu0 0.0
    %224 = vmatpush2.msra.mxu0 0.0
    %225 = vmatprep.subr.mxu0 0.0
    %226 = vmatpush2.msra.mxu0 0.0
    %227 = vmatprep.subr.mxu0 0.0
    %228 = vmatpush2.msra.mxu0 0.0
    %229 = vmatprep.subr.mxu0 0.0
    %230 = vmatpush2.msra.mxu0 0.0
    %231 = vmatprep.subr.mxu0 0.0
    %232 = vmatpush2.msra.mxu0 0.0
    %233 = vmatprep.mubr.f32.mxu0 0.0
    %234 = vmatmul.mubr.f32.gmra.mxu0 %v151
    %v235 = vpop.f32.mrf.mxu0
    %v236 = vadd.f32 0.0, %v235
    %v237 = vpop.f32.mrf.mxu0
    %238 = vdwg.mxu0
    %v239 = vadd.f32 %v152, %v236
    %240 = vst [vmem:[#allocation2] sm:$0xff] %v239
    // Predicated region
    $region38: #{mlp_forward.1} parent=1 // pred_check
      %p241 = pneg %p60
    $region39: #{mlp_forward.1} parent=1 // pred_check_branch
      %243 = sbr.rel (%p241) target = $region41
    $region40: #{mlp_forward.1} parent=1 // pred_region
      %v244 = vld [vmem:[#allocation2] sm:$0xff]
      %v245 = vld [vmem:[%s4] sm:$0x1]
      %v247 = vlaneseq
      %v248 = vshrl.u32 %v247, 7
      %v249 = vsub.s32 0, %v248
      %v250 = vrot.slane %v245, %v249
      %v252 = vadd.f32 %v244, %v250
      %253 = vst [vmem:[#allocation9] sm:$0xff] %v252
    $region41: #{mlp_forward.1} parent=1 // pred_fallthru
      _
    // Predicated region
    $region42: #{mlp_forward.1} parent=1 // pred_check
      _
    $region43: #{mlp_forward.1} parent=1 // pred_check_branch
      %255 = sbr.rel (0) target = $region45
    $region44: #{mlp_forward.1} parent=1 // pred_region
      %s257 = ssub.s32 128, 128
      %258 = vsyncadd [#allocation5], %s257
      %s260 = sshll.u32 [#allocation9], 4
      %s261 = int_to_ptr.vmem [resolvable:$true] %s260
      %263 = dma.vmem_to_hbm [thread:$0]  %s261, 128, %s5, [#allocation5]
    $region45: #{mlp_forward.1} parent=1 // pred_fallthru
      _
    // Predicated region
    $region46: #{mlp_forward.1} parent=1 // pred_check
      _
    $region47: #{mlp_forward.1} parent=1 // pred_check_branch
      %265 = sbr.rel (0) target = $region49
    $region48: #{mlp_forward.1} parent=1 // pred_region
      %266 = dma.done [#allocation5], 128
    $region49: #{mlp_forward.1} parent=1 // pred_fallthru
      _
    %267 = vsyncpa [#allocation4], 1
    %268 = vsyncpa [#allocation7], 1
    %269 = vsyncpa [#allocation5], 1

</llo_original>
